<compile_context>
chip_gen: v7x
topology: tpu7x:2x2x1
jax: 0.10.0
libtpu: 0.0.40
codegen_flags: <defaults>
</compile_context>

<pallas_src>
import functools

import jax
import jax.numpy as jnp
from jax.experimental import pallas as pl
from jax.experimental.pallas import tpu as pltpu


def _round_up(n, m):
    return ((n + m - 1) // m) * m


# ---------------------------------------------------------------------------
# Kernel: one batch tile -> fused 3-layer MLP -> lane-dense output slab.
# ---------------------------------------------------------------------------
def _mlp_base_kernel(x_ref, w1_ref, b1_ref, w2_ref, b2_ref, w3_ref, b3_ref,
                     out_ref):
    mm_dtype = w1_ref.dtype                      # f32 or bf16 matmul operands
    x = x_ref[...].astype(mm_dtype)

    # layer 1: (TB, F) @ (F, 2H) -> (TB, 2H); f32 accumulate, f32 bias + tanh
    h = jnp.dot(x, w1_ref[...], preferred_element_type=jnp.float32) + b1_ref[...]
    h = jnp.tanh(h).astype(mm_dtype)

    # layer 2: block-diagonal (2H, 2H) keeps actor/critic halves independent
    h = jnp.dot(h, w2_ref[...], preferred_element_type=jnp.float32) + b2_ref[...]
    h = jnp.tanh(h).astype(mm_dtype)

    # layer 3: (TB, 2H) @ (2H, N_pad) -> lane-dense output (logits | value | 0s)
    out = jnp.dot(h, w3_ref[...], preferred_element_type=jnp.float32) + b3_ref[...]
    out_ref[...] = out.astype(out_ref.dtype)


# ---------------------------------------------------------------------------
# Wrapper
# ---------------------------------------------------------------------------
@functools.partial(jax.jit, static_argnames=("num_action_logits", "batch_tile"))
def _mlp_base_call(x, W1, b1, W2, b2, W3, b3, *, num_action_logits, batch_tile):
    B, F = x.shape
    N = W3.shape[1]

    TB = min(batch_tile, _round_up(B, 8))        # batch tile, multiple of 8
    B_pad = _round_up(B, TB)
    if B_pad != B:
        x = jnp.pad(x, ((0, B_pad - B), (0, 0)))

    grid = (B_pad // TB,)

    out = pl.pallas_call(
        _mlp_base_kernel,
        out_shape=jax.ShapeDtypeStruct((B_pad, N), jnp.float32),
        grid=grid,
        in_specs=[
            pl.BlockSpec((TB, F), lambda i: (i, 0)),      # batch-tiled input
            pl.BlockSpec(W1.shape, lambda i: (0, 0)),     # weights: resident
            pl.BlockSpec(b1.shape, lambda i: (0, 0)),
            pl.BlockSpec(W2.shape, lambda i: (0, 0)),
            pl.BlockSpec(b2.shape, lambda i: (0, 0)),
            pl.BlockSpec(W3.shape, lambda i: (0, 0)),
            pl.BlockSpec(b3.shape, lambda i: (0, 0)),
        ],
        out_specs=pl.BlockSpec((TB, N), lambda i: (i, 0)),
        compiler_params=pltpu.CompilerParams(
            dimension_semantics=("parallel",)),           # 2 TCs on v7x
    )(x, W1, b1, W2, b2, W3, b3)

    A = num_action_logits
    logits = out[:B, :A]
    value = out[:B, A]
    return value, logits


def mlp_base_forward(x, fused, *, batch_tile=512):
    """Returns (value, action_logits) matching MLPBase.forward semantics."""
    # TODO(synk): DictActionHead wraps the logits into (torch) action
    # distributions; no clean Pallas equivalent — we return raw action logits.
    return _mlp_base_call(
        x, fused["W1"], fused["b1"], fused["W2"], fused["b2"],
        fused["W3"], fused["b3"],
        num_action_logits=fused["num_action_logits"], batch_tile=batch_tile)


# ---------------------------------------------------------------------------
# Parameter construction / fusion (done once, outside the kernel)
# ---------------------------------------------------------------------------
def _init_linear(key, fan_in, fan_out, gain):
    # Deterministic synthetic init (stand-in for orthogonal mlp_init).
    kw, _ = jax.random.split(key)
    w = gain * jax.random.normal(kw, (fan_in, fan_out), jnp.float32) / jnp.sqrt(fan_in)
    b = jnp.zeros((1, fan_out), jnp.float32)
    return w, b


def make_params(key, num_inputs, hidden, num_action_logits):
    ks = jax.random.split(key, 6)
    w1a, b1a = _init_linear(ks[0], num_inputs, hidden, gain=jnp.sqrt(2.0))
    w2a, b2a = _init_linear(ks[1], hidden, hidden, gain=jnp.sqrt(2.0))
    w3a, b3a = _init_linear(ks[2], hidden, num_action_logits, gain=0.01)
    w1c, b1c = _init_linear(ks[3], num_inputs, hidden, gain=jnp.sqrt(2.0))
    w2c, b2c = _init_linear(ks[4], hidden, hidden, gain=jnp.sqrt(2.0))
    w3c, b3c = _init_linear(ks[5], hidden, 1, gain=1.0)
    return dict(w1a=w1a, b1a=b1a, w2a=w2a, b2a=b2a, w3a=w3a, b3a=b3a,
                w1c=w1c, b1c=b1c, w2c=w2c, b2c=b2c, w3c=w3c, b3c=b3c)


def pack_params(p, num_action_logits, *, matmul_dtype=jnp.float32, lane_pad=128):
    """Fuse actor+critic into 3 lane-aligned matmuls (weights packed once)."""
    hidden = p["w1a"].shape[1]
    A = num_action_logits

    # Layer 1: concat along output dim -> (F, 2H)
    W1 = jnp.concatenate([p["w1a"], p["w1c"]], axis=1)
    b1 = jnp.concatenate([p["b1a"], p["b1c"]], axis=1)

    # Layer 2: block-diagonal -> (2H, 2H)
    Z = jnp.zeros((hidden, hidden), jnp.float32)
    W2 = jnp.block([[p["w2a"], Z], [Z, p["w2c"]]])
    b2 = jnp.concatenate([p["b2a"], p["b2c"]], axis=1)

    # Layer 3: block-diagonal, lane-padded to a 128-multiple output width.
    N = _round_up(max(A + 1, lane_pad), lane_pad)
    W3 = jnp.zeros((2 * hidden, N), jnp.float32)
    W3 = W3.at[:hidden, :A].set(p["w3a"])
    W3 = W3.at[hidden:, A:A + 1].set(p["w3c"])
    b3 = jnp.zeros((1, N), jnp.float32)
    b3 = b3.at[:, :A].set(p["b3a"])
    b3 = b3.at[:, A:A + 1].set(p["b3c"])

    # Matmul operands may be bf16 (v6e/v7x); biases / accumulation stay f32.
    return dict(W1=W1.astype(matmul_dtype), b1=b1,
                W2=W2.astype(matmul_dtype), b2=b2,
                W3=W3.astype(matmul_dtype), b3=b3,
                num_action_logits=A)


def _reference_forward(x, p):
    h = jnp.tanh(x @ p["w1a"] + p["b1a"])
    h = jnp.tanh(h @ p["w2a"] + p["b2a"])
    logits = h @ p["w3a"] + p["b3a"]
    c = jnp.tanh(x @ p["w1c"] + p["b1c"])
    c = jnp.tanh(c @ p["w2c"] + p["b2c"])
    value = (c @ p["w3c"] + p["b3c"]).reshape((x.shape[0],))
    return value, logits


if __name__ == "__main__":
    batch = 8
    num_inputs = 16        # observation_space[key].shape[0]
    hidden = 64            # hidden_size default
    num_action_logits = 6  # action_head.num_inputs (synthetic)

    key = jax.random.PRNGKey(0)
    k_obs, k_params, k_obs2 = jax.random.split(key, 3)
    x = jax.random.normal(k_obs, (batch, num_inputs), jnp.float32)  # obs[self.key]
    params = make_params(k_params, num_inputs, hidden, num_action_logits)

    # --- f32 path (exact vs reference) -------------------------------------
    fused_f32 = pack_params(params, num_action_logits, matmul_dtype=jnp.float32)
    value, logits = mlp_base_forward(x, fused_f32)
    jax.block_until_ready((value, logits))

    assert value.shape == (batch,)
    assert logits.shape == (batch, num_action_logits)

    ref_value, ref_logits = _reference_forward(x, params)
    assert jnp.allclose(value, ref_value, atol=1e-5, rtol=1e-5)
    assert jnp.allclose(logits, ref_logits, atol=1e-5, rtol=1e-5)

    # --- padding path: batch not a multiple of the 8-sublane tile ----------
    batch_odd = 13
    x_odd = jax.random.normal(k_obs2, (batch_odd, num_inputs), jnp.float32)
    v_odd, l_odd = mlp_base_forward(x_odd, fused_f32)
    jax.block_until_ready((v_odd, l_odd))
    rv_odd, rl_odd = _reference_forward(x_odd, params)
    assert v_odd.shape == (batch_odd,)
    assert l_odd.shape == (batch_odd, num_action_logits)
    assert jnp.allclose(v_odd, rv_odd, atol=1e-5, rtol=1e-5)
    assert jnp.allclose(l_odd, rl_odd, atol=1e-5, rtol=1e-5)

    # --- multi-tile batch path (exercises the grid loop) --------------------
    batch_big = 1030
    x_big = jax.random.normal(jax.random.PRNGKey(7), (batch_big, num_inputs),
                              jnp.float32)
    v_big, l_big = mlp_base_forward(x_big, fused_f32)
    jax.block_until_ready((v_big, l_big))
    rv_big, rl_big = _reference_forward(x_big, params)
    assert v_big.shape == (batch_big,)
    assert l_big.shape == (batch_big, num_action_logits)
    assert jnp.allclose(v_big, rv_big, atol=1e-5, rtol=1e-5)
    assert jnp.allclose(l_big, rl_big, atol=1e-5, rtol=1e-5)

    # --- bf16 matmul-operand path (v6e/v7x throughput option) --------------
    fused_bf16 = pack_params(params, num_action_logits, matmul_dtype=jnp.bfloat16)
    v_bf16, l_bf16 = mlp_base_forward(x, fused_bf16)
    jax.block_until_ready((v_bf16, l_bf16))
    assert bool(jnp.all(jnp.isfinite(v_bf16))) and bool(jnp.all(jnp.isfinite(l_bf16)))
    assert jnp.allclose(v_bf16, ref_value, atol=5e-2, rtol=5e-2)
    assert jnp.allclose(l_bf16, ref_logits, atol=5e-2, rtol=5e-2)

    print("KERNEL_OK")
</pallas_src>

<mosaic_0001>
module attributes {stable_mosaic.version = 11 : i64} {
  func.func @_mlp_base_kernel(%arg0: i32, %arg1: memref<8x16xf32, #tpu.memory_space<vmem>>, %arg2: memref<16x128xf32, #tpu.memory_space<vmem>>, %arg3: memref<1x128xf32, #tpu.memory_space<vmem>>, %arg4: memref<128x128xf32, #tpu.memory_space<vmem>>, %arg5: memref<1x128xf32, #tpu.memory_space<vmem>>, %arg6: memref<128x128xf32, #tpu.memory_space<vmem>>, %arg7: memref<1x128xf32, #tpu.memory_space<vmem>>, %arg8: memref<8x128xf32, #tpu.memory_space<vmem>>) attributes {dimension_semantics = [#tpu.dimension_semantics<parallel>], iteration_bounds = array<i64: 1>, scalar_prefetch = 0 : i64, scratch_operands = 0 : i64, tpu.core_type = #tpu.core_type<tc>, window_params = [{transform_indices = @transform_0, window_bounds = array<i64: 8, 16>}, {pipeline_mode = #tpu.pipeline_mode<synchronous>, transform_indices = @transform_1, window_bounds = array<i64: 16, 128>}, {pipeline_mode = #tpu.pipeline_mode<synchronous>, transform_indices = @transform_2, window_bounds = array<i64: 1, 128>}, {pipeline_mode = #tpu.pipeline_mode<synchronous>, transform_indices = @transform_3, window_bounds = array<i64: 128, 128>}, {pipeline_mode = #tpu.pipeline_mode<synchronous>, transform_indices = @transform_4, window_bounds = array<i64: 1, 128>}, {pipeline_mode = #tpu.pipeline_mode<synchronous>, transform_indices = @transform_5, window_bounds = array<i64: 128, 128>}, {pipeline_mode = #tpu.pipeline_mode<synchronous>, transform_indices = @transform_6, window_bounds = array<i64: 1, 128>}, {transform_indices = @transform_7, window_bounds = array<i64: 8, 128>}]} {
    %c0 = arith.constant 0 : index
    %c0_0 = arith.constant 0 : index
    %0 = vector.load %arg1[%c0, %c0_0] : memref<8x16xf32, #tpu.memory_space<vmem>>, vector<8x16xf32>
    %c0_1 = arith.constant 0 : index
    %c0_2 = arith.constant 0 : index
    %1 = vector.load %arg2[%c0_1, %c0_2] : memref<16x128xf32, #tpu.memory_space<vmem>>, vector<16x128xf32>
    %cst = arith.constant dense<0.000000e+00> : vector<8x128xf32>
    %2 = tpu.matmul %0, %1, %cst {dimension_numbers = #tpu.dot_dimension_numbers<[1], [0], [0], [1], [0, 0, 1, 1], [], []>} : vector<8x16xf32>, vector<16x128xf32>, vector<8x128xf32> -> vector<8x128xf32>
    %c0_3 = arith.constant 0 : index
    %c0_4 = arith.constant 0 : index
    %3 = vector.load %arg3[%c0_3, %c0_4] : memref<1x128xf32, #tpu.memory_space<vmem>>, vector<1x128xf32>
    %4 = vector.broadcast %3 : vector<1x128xf32> to vector<8x128xf32>
    %5 = arith.addf %2, %4 : vector<8x128xf32>
    %6 = math.tanh %5 : vector<8x128xf32>
    %c0_5 = arith.constant 0 : index
    %c0_6 = arith.constant 0 : index
    %7 = vector.load %arg4[%c0_5, %c0_6] : memref<128x128xf32, #tpu.memory_space<vmem>>, vector<128x128xf32>
    %cst_7 = arith.constant dense<0.000000e+00> : vector<8x128xf32>
    %8 = tpu.matmul %6, %7, %cst_7 {dimension_numbers = #tpu.dot_dimension_numbers<[1], [0], [0], [1], [0, 0, 1, 1], [], []>} : vector<8x128xf32>, vector<128x128xf32>, vector<8x128xf32> -> vector<8x128xf32>
    %c0_8 = arith.constant 0 : index
    %c0_9 = arith.constant 0 : index
    %9 = vector.load %arg5[%c0_8, %c0_9] : memref<1x128xf32, #tpu.memory_space<vmem>>, vector<1x128xf32>
    %10 = vector.broadcast %9 : vector<1x128xf32> to vector<8x128xf32>
    %11 = arith.addf %8, %10 : vector<8x128xf32>
    %12 = math.tanh %11 : vector<8x128xf32>
    %c0_10 = arith.constant 0 : index
    %c0_11 = arith.constant 0 : index
    %13 = vector.load %arg6[%c0_10, %c0_11] : memref<128x128xf32, #tpu.memory_space<vmem>>, vector<128x128xf32>
    %cst_12 = arith.constant dense<0.000000e+00> : vector<8x128xf32>
    %14 = tpu.matmul %12, %13, %cst_12 {dimension_numbers = #tpu.dot_dimension_numbers<[1], [0], [0], [1], [0, 0, 1, 1], [], []>} : vector<8x128xf32>, vector<128x128xf32>, vector<8x128xf32> -> vector<8x128xf32>
    %c0_13 = arith.constant 0 : index
    %c0_14 = arith.constant 0 : index
    %15 = vector.load %arg7[%c0_13, %c0_14] : memref<1x128xf32, #tpu.memory_space<vmem>>, vector<1x128xf32>
    %16 = vector.broadcast %15 : vector<1x128xf32> to vector<8x128xf32>
    %17 = arith.addf %14, %16 : vector<8x128xf32>
    %c0_15 = arith.constant 0 : index
    %c0_16 = arith.constant 0 : index
    %18 = vector.load %arg8[%c0_15, %c0_16] : memref<8x128xf32, #tpu.memory_space<vmem>>, vector<8x128xf32>
    tpu.vector_store %arg8[%c0_15, %c0_16], %17 {strides = array<i32>} : memref<8x128xf32, #tpu.memory_space<vmem>>, vector<8x128xf32>,
    return
  }
  func.func @transform_0(%arg0: i32) -> (i32, i32) {
    %c0_i32 = arith.constant 0 : i32
    %c0_i32_0 = arith.constant 0 : i32
    return %arg0, %c0_i32 : i32, i32
  }
  func.func @transform_1(%arg0: i32) -> (i32, i32) {
    %c0_i32 = arith.constant 0 : i32
    %c0_i32_0 = arith.constant 0 : i32
    %c0_i32_1 = arith.constant 0 : i32
    return %c0_i32, %c0_i32_0 : i32, i32
  }
  func.func @transform_2(%arg0: i32) -> (i32, i32) {
    %c0_i32 = arith.constant 0 : i32
    %c0_i32_0 = arith.constant 0 : i32
    %c0_i32_1 = arith.constant 0 : i32
    return %c0_i32, %c0_i32_0 : i32, i32
  }
  func.func @transform_3(%arg0: i32) -> (i32, i32) {
    %c0_i32 = arith.constant 0 : i32
    %c0_i32_0 = arith.constant 0 : i32
    %c0_i32_1 = arith.constant 0 : i32
    return %c0_i32, %c0_i32_0 : i32, i32
  }
  func.func @transform_4(%arg0: i32) -> (i32, i32) {
    %c0_i32 = arith.constant 0 : i32
    %c0_i32_0 = arith.constant 0 : i32
    %c0_i32_1 = arith.constant 0 : i32
    return %c0_i32, %c0_i32_0 : i32, i32
  }
  func.func @transform_5(%arg0: i32) -> (i32, i32) {
    %c0_i32 = arith.constant 0 : i32
    %c0_i32_0 = arith.constant 0 : i32
    %c0_i32_1 = arith.constant 0 : i32
    return %c0_i32, %c0_i32_0 : i32, i32
  }
  func.func @transform_6(%arg0: i32) -> (i32, i32) {
    %c0_i32 = arith.constant 0 : i32
    %c0_i32_0 = arith.constant 0 : i32
    %c0_i32_1 = arith.constant 0 : i32
    return %c0_i32, %c0_i32_0 : i32, i32
  }
  func.func @transform_7(%arg0: i32) -> (i32, i32) {
    %c0_i32 = arith.constant 0 : i32
    %c0_i32_0 = arith.constant 0 : i32
    return %arg0, %c0_i32 : i32, i32
  }
}

</mosaic_0001>

<llo_original>
// kernel: _mlp_base_call.1
$region0: #{_mlp_base_call.1}
  #allocation0 [shape = 'u32[]', space=smem, size = 0x4, offset = 0x4, fixed_abs, tag = 'smem constant byte address 0x4 - core index']
  #allocation1 [shape = 'u32[144,128]{1,0:T(1,128)}', space=vmem, size = 0x12000, scoped, tag = 'internal scratch']
  %s0 = inlined_call_operand.hbm [shape: f32[8,16], index: 0, kind: input, shape index: {}]
  %s1 = inlined_call_operand.hbm [shape: f32[16,128], index: 1, kind: input, shape index: {}]
  %s2 = inlined_call_operand.vmem [shape: f32[1,128], index: 2, kind: input, shape index: {}]
  %s3 = inlined_call_operand.hbm [shape: f32[128,128], index: 3, kind: input, shape index: {}]
  %s4 = inlined_call_operand.vmem [shape: f32[1,128], index: 4, kind: input, shape index: {}]
  %s5 = inlined_call_operand.hbm [shape: f32[128,128], index: 5, kind: input, shape index: {}]
  %s6 = inlined_call_operand.vmem [shape: f32[1,128], index: 6, kind: input, shape index: {}]
  %s7 = inlined_call_operand.vmem [shape: f32[8,128], index: 7, kind: output, shape index: {}]
  %s8 = sld [smem:[#allocation0]]
  $region54: #{_mlp_base_call.1} parent=0
    _
  %s10 = ssub.s32 1, %s8
  %s11 = scalar_select 0, %s10, %s8
  $region1: #{_mlp_base_call.1} parent=0
    #allocation2 [shape = 'u8[4096]{0}', space=vmem, size = 0x1000, scoped, tag = 'input window, operand 0, single buffered']
    #allocation3 [shape = 's32[1]{0}', space=sflag, size = 0x4, scoped, tag = 'scoped memory for _mlp_base_call.1']
    #allocation4 [shape = 'u8[8192]{0}', space=vmem, size = 0x2000, scoped, tag = 'input window, operand 1, single buffered']
    #allocation5 [shape = 's32[1]{0}', space=sflag, size = 0x4, scoped, tag = 'scoped memory for _mlp_base_call.1']
    #allocation6 [shape = 'u8[65536]{0}', space=vmem, size = 0x10000, scoped, tag = 'input window, operand 3, single buffered']
    #allocation7 [shape = 'u8[65536]{0}', space=vmem, size = 0x10000, scoped, tag = 'input window, operand 5, single buffered']
    #allocation8 [shape = 's32[1]{0}', space=sflag, size = 0x4, scoped, tag = 'scoped memory for _mlp_base_call.1']
    %12 = vsyncpa [#allocation3], 0
    %13 = vsyncpa [#allocation5], 0
    %14 = vsyncpa [#allocation8], 0
    // Predicated region
    $region2: #{_mlp_base_call.1} parent=1 // pred_check
      _
    $region3: #{_mlp_base_call.1} parent=1 // pred_check_branch
      %16 = sbr.rel (0) target = $region5
    $region4: #{_mlp_base_call.1} parent=1 // pred_region
      %s18 = ssub.s32 128, 128
      %19 = vsyncadd [#allocation3], %s18
      %s21 = sshll.u32 [#allocation2], 4
      %s22 = int_to_ptr.vmem [resolvable:$true] %s21
      %24 = dma.hbm_to_vmem [thread:$0]  %s0, 128, %s22, [#allocation3]
    $region5: #{_mlp_base_call.1} parent=1 // pred_fallthru
      _
    // Predicated region
    $region6: #{_mlp_base_call.1} parent=1 // pred_check
      _
    $region7: #{_mlp_base_call.1} parent=1 // pred_check_branch
      %26 = sbr.rel (0) target = $region9
    $region8: #{_mlp_base_call.1} parent=1 // pred_region
      %s28 = ssub.s32 256, 256
      %29 = vsyncadd [#allocation5], %s28
      %s30 = sshll.u32 [#allocation4], 4
      %s31 = int_to_ptr.vmem [resolvable:$true] %s30
      %36 = dma.hbm_to_vmem [thread:$0]  %s1, 256, %s31, [#allocation5], 128, 128, 8
    $region9: #{_mlp_base_call.1} parent=1 // pred_fallthru
      _
    // Predicated region
    $region10: #{_mlp_base_call.1} parent=1 // pred_check
      _
    $region11: #{_mlp_base_call.1} parent=1 // pred_check_branch
      %38 = sbr.rel (0) target = $region13
    $region12: #{_mlp_base_call.1} parent=1 // pred_region
      _
    $region13: #{_mlp_base_call.1} parent=1 // pred_fallthru
      _
    // Predicated region
    $region14: #{_mlp_base_call.1} parent=1 // pred_check
      _
    $region15: #{_mlp_base_call.1} parent=1 // pred_check_branch
      %40 = sbr.rel (0) target = $region17
    $region16: #{_mlp_base_call.1} parent=1 // pred_region
      %s42 = ssub.s32 2048, 2048
      %43 = vsyncadd [#allocation5], %s42
      %s44 = sshll.u32 [#allocation6], 4
      %s45 = int_to_ptr.vmem [resolvable:$true] %s44
      %50 = dma.hbm_to_vmem [thread:$0]  %s3, 2048, %s45, [#allocation5], 128, 128, 8
    $region17: #{_mlp_base_call.1} parent=1 // pred_fallthru
      _
    // Predicated region
    $region18: #{_mlp_base_call.1} parent=1 // pred_check
      _
    $region19: #{_mlp_base_call.1} parent=1 // pred_check_branch
      %52 = sbr.rel (0) target = $region21
    $region20: #{_mlp_base_call.1} parent=1 // pred_region
      _
    $region21: #{_mlp_base_call.1} parent=1 // pred_fallthru
      _
    // Predicated region
    $region22: #{_mlp_base_call.1} parent=1 // pred_check
      _
    $region23: #{_mlp_base_call.1} parent=1 // pred_check_branch
      %54 = sbr.rel (0) target = $region25
    $region24: #{_mlp_base_call.1} parent=1 // pred_region
      %s56 = ssub.s32 2048, 2048
      %57 = vsyncadd [#allocation8], %s56
      %s58 = sshll.u32 [#allocation7], 4
      %s59 = int_to_ptr.vmem [resolvable:$true] %s58
      %64 = dma.hbm_to_vmem [thread:$0]  %s5, 2048, %s59, [#allocation8], 128, 128, 8
    $region25: #{_mlp_base_call.1} parent=1 // pred_fallthru
      _
    // Predicated region
    $region26: #{_mlp_base_call.1} parent=1 // pred_check
      _
    $region27: #{_mlp_base_call.1} parent=1 // pred_check_branch
      %66 = sbr.rel (0) target = $region29
    $region28: #{_mlp_base_call.1} parent=1 // pred_region
      _
    $region29: #{_mlp_base_call.1} parent=1 // pred_fallthru
      _
    // Predicated region
    $region30: #{_mlp_base_call.1} parent=1 // pred_check
      _
    $region31: #{_mlp_base_call.1} parent=1 // pred_check_branch
      %68 = sbr.rel (0) target = $region33
    $region32: #{_mlp_base_call.1} parent=1 // pred_region
      %69 = dma.done [#allocation3], 128
    $region33: #{_mlp_base_call.1} parent=1 // pred_fallthru
      _
    // Predicated region
    $region34: #{_mlp_base_call.1} parent=1 // pred_check
      _
    $region35: #{_mlp_base_call.1} parent=1 // pred_check_branch
      %71 = sbr.rel (0) target = $region37
    $region36: #{_mlp_base_call.1} parent=1 // pred_region
      %72 = dma.done [#allocation5], 256
    $region37: #{_mlp_base_call.1} parent=1 // pred_fallthru
      _
    // Predicated region
    $region38: #{_mlp_base_call.1} parent=1 // pred_check
      _
    $region39: #{_mlp_base_call.1} parent=1 // pred_check_branch
      %74 = sbr.rel (0) target = $region41
    $region40: #{_mlp_base_call.1} parent=1 // pred_region
      %75 = dma.done [#allocation5], 2048
    $region41: #{_mlp_base_call.1} parent=1 // pred_fallthru
      _
    // Predicated region
    $region42: #{_mlp_base_call.1} parent=1 // pred_check
      _
    $region43: #{_mlp_base_call.1} parent=1 // pred_check_branch
      %77 = sbr.rel (0) target = $region45
    $region44: #{_mlp_base_call.1} parent=1 // pred_region
      %78 = dma.done [#allocation8], 2048
    $region45: #{_mlp_base_call.1} parent=1 // pred_fallthru
      _
    %v79 = vld [vmem:[#allocation2] sm:$0xff]
    %v80 = vld [vmem:[#allocation4] sm:$0xff]
    %v81 = vld [vmem:[#allocation4 + $0x8] sm:$0xff]
    %v82 = vld [vmem:[%s2] sm:$0x1]
    %v84 = vlaneseq
    %v85 = vshrl.u32 %v84, 7
    %v86 = vsub.s32 0, %v85
    %v87 = vrot.slane %v82, %v86
    %vm89 = vcmask 130048
    %v91 = vsel %vm89, %v79, 0
    %93 = vmatprep.subr.mxu0 0.0
    %94 = vmatpush1.msra.mxu0 %v80
    %95 = vmatprep.subr.mxu0 0.0
    %96 = vmatpush1.msra.mxu0 %v81
    %97 = vmatprep.subr.mxu0 0.0
    %98 = vmatpush1.msra.mxu0 0.0
    %99 = vmatprep.subr.mxu0 0.0
    %100 = vmatpush1.msra.mxu0 0.0
    %101 = vmatprep.subr.mxu0 0.0
    %102 = vmatpush1.msra.mxu0 0.0
    %103 = vmatprep.subr.mxu0 0.0
    %104 = vmatpush1.msra.mxu0 0.0
    %105 = vmatprep.subr.mxu0 0.0
    %106 = vmatpush1.msra.mxu0 0.0
    %107 = vmatprep.subr.mxu0 0.0
    %108 = vmatpush1.msra.mxu0 0.0
    %109 = vmatprep.subr.mxu0 0.0
    %110 = vmatpush1.msra.mxu0 0.0
    %111 = vmatprep.subr.mxu0 0.0
    %112 = vmatpush1.msra.mxu0 0.0
    %113 = vmatprep.subr.mxu0 0.0
    %114 = vmatpush1.msra.mxu0 0.0
    %115 = vmatprep.subr.mxu0 0.0
    %116 = vmatpush1.msra.mxu0 0.0
    %117 = vmatprep.subr.mxu0 0.0
    %118 = vmatpush1.msra.mxu0 0.0
    %119 = vmatprep.subr.mxu0 0.0
    %120 = vmatpush1.msra.mxu0 0.0
    %121 = vmatprep.subr.mxu0 0.0
    %122 = vmatpush1.msra.mxu0 0.0
    %123 = vmatprep.subr.mxu0 0.0
    %124 = vmatpush1.msra.mxu0 0.0
    %125 = vmatprep.subr.mxu0 0.0
    %126 = vmatpush1.msra.mxu0 0.0
    %127 = vmatprep.subr.mxu0 0.0
    %128 = vmatpush1.msra.mxu0 0.0
    %129 = vmatprep.subr.mxu0 0.0
    %130 = vmatpush1.msra.mxu0 0.0
    %131 = vmatprep.subr.mxu0 0.0
    %132 = vmatpush1.msra.mxu0 0.0
    %133 = vmatprep.subr.mxu0 0.0
    %134 = vmatpush1.msra.mxu0 0.0
    %135 = vmatprep.subr.mxu0 0.0
    %136 = vmatpush1.msra.mxu0 0.0
    %137 = vmatprep.subr.mxu0 0.0
    %138 = vmatpush1.msra.mxu0 0.0
    %139 = vmatprep.subr.mxu0 0.0
    %140 = vmatpush1.msra.mxu0 0.0
    %141 = vmatprep.subr.mxu0 0.0
    %142 = vmatpush1.msra.mxu0 0.0
    %143 = vmatprep.subr.mxu0 0.0
    %144 = vmatpush1.msra.mxu0 0.0
    %145 = vmatprep.subr.mxu0 0.0
    %146 = vmatpush1.msra.mxu0 0.0
    %147 = vmatprep.subr.mxu0 0.0
    %148 = vmatpush1.msra.mxu0 0.0
    %149 = vmatprep.subr.mxu0 0.0
    %150 = vmatpush1.msra.mxu0 0.0
    %151 = vmatprep.subr.mxu0 0.0
    %152 = vmatpush1.msra.mxu0 0.0
    %153 = vmatprep.subr.mxu0 0.0
    %154 = vmatpush1.msra.mxu0 0.0
    %155 = vmatprep.subr.mxu0 0.0
    %156 = vmatpush1.msra.mxu0 0.0
    %157 = vmatprep.mubr.f32.mxu0 0.0
    %158 = vmatmul.mubr.f32.gmra.mrb[0].mxu0 %v91
    %v159 = vpop.f32.mrb[0].mxu0
    %v160 = vadd.f32 %v87, %v159
    %v161 = vpop.f32.mrb[0].mxu0
    %162 = vdwg.mxu0
    %v163 = vtanh.pop %v160
    %v164 = vld [vmem:[#allocation6] sm:$0xff]
    %v165 = vld [vmem:[#allocation6 + $0x8] sm:$0xff]
    %v166 = vld [vmem:[#allocation6 + $0x10] sm:$0xff]
    %v167 = vld [vmem:[#allocation6 + $0x18] sm:$0xff]
    %v168 = vld [vmem:[#allocation6 + $0x20] sm:$0xff]
    %v169 = vld [vmem:[#allocation6 + $0x28] sm:$0xff]
    %v170 = vld [vmem:[#allocation6 + $0x30] sm:$0xff]
    %v171 = vld [vmem:[#allocation6 + $0x38] sm:$0xff]
    %v172 = vld [vmem:[#allocation6 + $0x40] sm:$0xff]
    %v173 = vld [vmem:[#allocation6 + $0x48] sm:$0xff]
    %v174 = vld [vmem:[#allocation6 + $0x50] sm:$0xff]
    %v175 = vld [vmem:[#allocation6 + $0x58] sm:$0xff]
    %v176 = vld [vmem:[#allocation6 + $0x60] sm:$0xff]
    %v177 = vld [vmem:[#allocation6 + $0x68] sm:$0xff]
    %v178 = vld [vmem:[#allocation6 + $0x70] sm:$0xff]
    %v179 = vld [vmem:[#allocation6 + $0x78] sm:$0xff]
    %v180 = vld [vmem:[%s4] sm:$0x1]
    %v182 = vlaneseq
    %v183 = vshrl.u32 %v182, 7
    %v184 = vsub.s32 0, %v183
    %v185 = vrot.slane %v180, %v184
    %187 = vmatprep.subr.mxu0 0.0
    %188 = vmatpush1.msra.mxu0 %v164
    %189 = vmatprep.subr.mxu0 0.0
    %190 = vmatpush1.msra.mxu0 %v165
    %191 = vmatprep.subr.mxu0 0.0
    %192 = vmatpush1.msra.mxu0 %v166
    %193 = vmatprep.subr.mxu0 0.0
    %194 = vmatpush1.msra.mxu0 %v167
    %195 = vmatprep.subr.mxu0 0.0
    %196 = vmatpush1.msra.mxu0 %v168
    %197 = vmatprep.subr.mxu0 0.0
    %198 = vmatpush1.msra.mxu0 %v169
    %199 = vmatprep.subr.mxu0 0.0
    %200 = vmatpush1.msra.mxu0 %v170
    %201 = vmatprep.subr.mxu0 0.0
    %202 = vmatpush1.msra.mxu0 %v171
    %203 = vmatprep.subr.mxu0 0.0
    %204 = vmatpush1.msra.mxu0 %v172
    %205 = vmatprep.subr.mxu0 0.0
    %206 = vmatpush1.msra.mxu0 %v173
    %207 = vmatprep.subr.mxu0 0.0
    %208 = vmatpush1.msra.mxu0 %v174
    %209 = vmatprep.subr.mxu0 0.0
    %210 = vmatpush1.msra.mxu0 %v175
    %211 = vmatprep.subr.mxu0 0.0
    %212 = vmatpush1.msra.mxu0 %v176
    %213 = vmatprep.subr.mxu0 0.0
    %214 = vmatpush1.msra.mxu0 %v177
    %215 = vmatprep.subr.mxu0 0.0
    %216 = vmatpush1.msra.mxu0 %v178
    %217 = vmatprep.subr.mxu0 0.0
    %218 = vmatpush1.msra.mxu0 %v179
    %219 = vmatprep.subr.mxu0 0.0
    %220 = vmatpush1.msra.mxu0 0.0
    %221 = vmatprep.subr.mxu0 0.0
    %222 = vmatpush1.msra.mxu0 0.0
    %223 = vmatprep.subr.mxu0 0.0
    %224 = vmatpush1.msra.mxu0 0.0
    %225 = vmatprep.subr.mxu0 0.0
    %226 = vmatpush1.msra.mxu0 0.0
    %227 = vmatprep.subr.mxu0 0.0
    %228 = vmatpush1.msra.mxu0 0.0
    %229 = vmatprep.subr.mxu0 0.0
    %230 = vmatpush1.msra.mxu0 0.0
    %231 = vmatprep.subr.mxu0 0.0
    %232 = vmatpush1.msra.mxu0 0.0
    %233 = vmatprep.subr.mxu0 0.0
    %234 = vmatpush1.msra.mxu0 0.0
    %235 = vmatprep.subr.mxu0 0.0
    %236 = vmatpush1.msra.mxu0 0.0
    %237 = vmatprep.subr.mxu0 0.0
    %238 = vmatpush1.msra.mxu0 0.0
    %239 = vmatprep.subr.mxu0 0.0
    %240 = vmatpush1.msra.mxu0 0.0
    %241 = vmatprep.subr.mxu0 0.0
    %242 = vmatpush1.msra.mxu0 0.0
    %243 = vmatprep.subr.mxu0 0.0
    %244 = vmatpush1.msra.mxu0 0.0
    %245 = vmatprep.subr.mxu0 0.0
    %246 = vmatpush1.msra.mxu0 0.0
    %247 = vmatprep.subr.mxu0 0.0
    %248 = vmatpush1.msra.mxu0 0.0
    %249 = vmatprep.subr.mxu0 0.0
    %250 = vmatpush1.msra.mxu0 0.0
    %251 = vmatprep.mubr.f32.mxu0 0.0
    %252 = vmatmul.mubr.f32.gmra.mrb[0].mxu0 %v163
    %v253 = vpop.f32.mrb[0].mxu0
    %v254 = vadd.f32 %v185, %v253
    %v255 = vpop.f32.mrb[0].mxu0
    %256 = vdwg.mxu0
    %v257 = vtanh.pop %v254
    %v258 = vld [vmem:[#allocation7] sm:$0xff]
    %v259 = vld [vmem:[#allocation7 + $0x8] sm:$0xff]
    %v260 = vld [vmem:[#allocation7 + $0x10] sm:$0xff]
    %v261 = vld [vmem:[#allocation7 + $0x18] sm:$0xff]
    %v262 = vld [vmem:[#allocation7 + $0x20] sm:$0xff]
    %v263 = vld [vmem:[#allocation7 + $0x28] sm:$0xff]
    %v264 = vld [vmem:[#allocation7 + $0x30] sm:$0xff]
    %v265 = vld [vmem:[#allocation7 + $0x38] sm:$0xff]
    %v266 = vld [vmem:[#allocation7 + $0x40] sm:$0xff]
    %v267 = vld [vmem:[#allocation7 + $0x48] sm:$0xff]
    %v268 = vld [vmem:[#allocation7 + $0x50] sm:$0xff]
    %v269 = vld [vmem:[#allocation7 + $0x58] sm:$0xff]
    %v270 = vld [vmem:[#allocation7 + $0x60] sm:$0xff]
    %v271 = vld [vmem:[#allocation7 + $0x68] sm:$0xff]
    %v272 = vld [vmem:[#allocation7 + $0x70] sm:$0xff]
    %v273 = vld [vmem:[#allocation7 + $0x78] sm:$0xff]
    %v274 = vld [vmem:[%s6] sm:$0x1]
    %v276 = vlaneseq
    %v277 = vshrl.u32 %v276, 7
    %v278 = vsub.s32 0, %v277
    %v279 = vrot.slane %v274, %v278
    %281 = vmatprep.subr.mxu0 0.0
    %282 = vmatpush1.msra.mxu0 %v258
    %283 = vmatprep.subr.mxu0 0.0
    %284 = vmatpush1.msra.mxu0 %v259
    %285 = vmatprep.subr.mxu0 0.0
    %286 = vmatpush1.msra.mxu0 %v260
    %287 = vmatprep.subr.mxu0 0.0
    %288 = vmatpush1.msra.mxu0 %v261
    %289 = vmatprep.subr.mxu0 0.0
    %290 = vmatpush1.msra.mxu0 %v262
    %291 = vmatprep.subr.mxu0 0.0
    %292 = vmatpush1.msra.mxu0 %v263
    %293 = vmatprep.subr.mxu0 0.0
    %294 = vmatpush1.msra.mxu0 %v264
    %295 = vmatprep.subr.mxu0 0.0
    %296 = vmatpush1.msra.mxu0 %v265
    %297 = vmatprep.subr.mxu0 0.0
    %298 = vmatpush1.msra.mxu0 %v266
    %299 = vmatprep.subr.mxu0 0.0
    %300 = vmatpush1.msra.mxu0 %v267
    %301 = vmatprep.subr.mxu0 0.0
    %302 = vmatpush1.msra.mxu0 %v268
    %303 = vmatprep.subr.mxu0 0.0
    %304 = vmatpush1.msra.mxu0 %v269
    %305 = vmatprep.subr.mxu0 0.0
    %306 = vmatpush1.msra.mxu0 %v270
    %307 = vmatprep.subr.mxu0 0.0
    %308 = vmatpush1.msra.mxu0 %v271
    %309 = vmatprep.subr.mxu0 0.0
    %310 = vmatpush1.msra.mxu0 %v272
    %311 = vmatprep.subr.mxu0 0.0
    %312 = vmatpush1.msra.mxu0 %v273
    %313 = vmatprep.subr.mxu0 0.0
    %314 = vmatpush1.msra.mxu0 0.0
    %315 = vmatprep.subr.mxu0 0.0
    %316 = vmatpush1.msra.mxu0 0.0
    %317 = vmatprep.subr.mxu0 0.0
    %318 = vmatpush1.msra.mxu0 0.0
    %319 = vmatprep.subr.mxu0 0.0
    %320 = vmatpush1.msra.mxu0 0.0
    %321 = vmatprep.subr.mxu0 0.0
    %322 = vmatpush1.msra.mxu0 0.0
    %323 = vmatprep.subr.mxu0 0.0
    %324 = vmatpush1.msra.mxu0 0.0
    %325 = vmatprep.subr.mxu0 0.0
    %326 = vmatpush1.msra.mxu0 0.0
    %327 = vmatprep.subr.mxu0 0.0
    %328 = vmatpush1.msra.mxu0 0.0
    %329 = vmatprep.subr.mxu0 0.0
    %330 = vmatpush1.msra.mxu0 0.0
    %331 = vmatprep.subr.mxu0 0.0
    %332 = vmatpush1.msra.mxu0 0.0
    %333 = vmatprep.subr.mxu0 0.0
    %334 = vmatpush1.msra.mxu0 0.0
    %335 = vmatprep.subr.mxu0 0.0
    %336 = vmatpush1.msra.mxu0 0.0
    %337 = vmatprep.subr.mxu0 0.0
    %338 = vmatpush1.msra.mxu0 0.0
    %339 = vmatprep.subr.mxu0 0.0
    %340 = vmatpush1.msra.mxu0 0.0
    %341 = vmatprep.subr.mxu0 0.0
    %342 = vmatpush1.msra.mxu0 0.0
    %343 = vmatprep.subr.mxu0 0.0
    %344 = vmatpush1.msra.mxu0 0.0
    %345 = vmatprep.mubr.f32.mxu0 0.0
    %346 = vmatmul.mubr.f32.gmra.mrb[0].mxu0 %v257
    %v347 = vpop.f32.mrb[0].mxu0
    %v348 = vadd.f32 %v279, %v347
    %v349 = vpop.f32.mrb[0].mxu0
    %350 = vdwg.mxu0
    %351 = vst [vmem:[%s7] sm:$0xff] %v348
    // Predicated region
    $region46: #{_mlp_base_call.1} parent=1 // pred_check
      _
    $region47: #{_mlp_base_call.1} parent=1 // pred_check_branch
      %353 = sbr.rel (0) target = $region49
    $region48: #{_mlp_base_call.1} parent=1 // pred_region
      _
    $region49: #{_mlp_base_call.1} parent=1 // pred_fallthru
      _
    // Predicated region
    $region50: #{_mlp_base_call.1} parent=1 // pred_check
      _
    $region51: #{_mlp_base_call.1} parent=1 // pred_check_branch
      %355 = sbr.rel (0) target = $region53
    $region52: #{_mlp_base_call.1} parent=1 // pred_region
      _
    $region53: #{_mlp_base_call.1} parent=1 // pred_fallthru
      _
    %356 = vsyncpa [#allocation3], 1
    %357 = vsyncpa [#allocation5], 1
    %358 = vsyncpa [#allocation8], 1

</llo_original>
